<compile_context>
chip_gen: v7x
topology: tpu7x:2x2x1
jax: 0.10.0
libtpu: 0.0.40
codegen_flags: <defaults>
</compile_context>

<pallas_src>
import functools

import jax
import jax.numpy as jnp
from jax import lax
from jax.experimental import pallas as pl
from jax.experimental.pallas import tpu as pltpu


# ----------------------------- Pallas kernel ------------------------------- #

_TASK_IDS = {
    "binary_classification": 0,
    "regression": 1,
    "classification_and_regression": 2,
}
_ACT_IDS = {"relu": 0, "tanh": 1, "leakyrelu": 2, "elu": 3}


def _mlp_kernel(task_id, activation_id, out_widths, *refs):
    """Fused MLP forward on one batch tile.

    refs = (x_ref, w0_ref, ..., wL_ref, bias_pack_ref, o_ref)
      x_ref:      (TM, Din_pad)        f32
      w{l}_ref:   (Kpad_l, Npad_l)     bf16   (pre-transposed, zero-padded)
      bias_pack:  (num_layers, max_N)  f32    (row l = layer-l bias, padded)
      o_ref:      (TM, Nout_pad)       f32
    """
    x_ref = refs[0]
    o_ref = refs[-1]
    b_ref = refs[-2]
    w_refs = refs[1:-2]
    n_layers = len(w_refs)

    def act(v):
        if activation_id == 0:      # relu
            return jnp.maximum(v, 0.0)
        elif activation_id == 1:    # tanh (EUP)
            return jnp.tanh(v)
        elif activation_id == 2:    # leakyrelu (PyTorch default slope 0.01)
            return jnp.where(v >= 0.0, v, 0.01 * v)
        elif activation_id == 3:    # elu (alpha=1.0); clamp arg to avoid inf
            return jnp.where(v >= 0.0, v, jnp.exp(jnp.minimum(v, 0.0)) - 1.0)
        else:
            raise ValueError("bad activation_id")

    h = x_ref[...]                                    # f32 activations
    for layer in range(n_layers):
        w = w_refs[layer][...]                        # bf16 (Kpad, Npad)
        n_out = out_widths[layer]
        b = b_ref[layer:layer + 1, :n_out]            # f32 (1, n_out)
        y = jnp.dot(h.astype(jnp.bfloat16), w,        # bf16 x bf16 -> f32 MXU
                    preferred_element_type=jnp.float32) + b
        # Hidden layers: activation; Dropout in eval mode = identity.
        h = act(y) if layer < n_layers - 1 else y

    logits = h                                        # (TM, Nout_pad) f32

    # task_specific_output (computed on the padded, lane-dense slab)
    if task_id == 0:        # binary_classification -> sigmoid everywhere
        out = jax.nn.sigmoid(logits)
    elif task_id == 1:      # regression -> identity
        out = logits
    elif task_id == 2:      # classification_and_regression
        # column 0: sigmoid, column 1+: raw.  Lane-index mask keeps the store
        # full-width (no narrow slice / concat on the lane axis).
        col = lax.broadcasted_iota(jnp.int32, logits.shape, dimension=1)
        out = jnp.where(col == 0, jax.nn.sigmoid(logits), logits)
    else:
        raise ValueError("bad task_id")

    o_ref[...] = out.astype(o_ref.dtype)


# ------------------------------ JAX wrapper -------------------------------- #

def _round_up(n, m):
    return (n + m - 1) // m * m


def init_mlp_params(key, input_dim, hidden_dims, output_dim, dtype=jnp.float32):
    """Deterministic PyTorch-Linear-style init.

    Returns a flat list [W0, b0, W1, b1, ...] with W stored as (in, out)
    and b as (out,)."""
    params = []
    dims = [input_dim] + list(hidden_dims) + [output_dim]
    for i in range(len(dims) - 1):
        fan_in, fan_out = dims[i], dims[i + 1]
        key, kw, kb = jax.random.split(key, 3)
        bound = 1.0 / (fan_in ** 0.5)
        w = jax.random.uniform(kw, (fan_in, fan_out), dtype, -bound, bound)
        b = jax.random.uniform(kb, (fan_out,), dtype, -bound, bound)
        params.extend([w, b])
    return params


def mlp_forward(x, params, *, task, activation, lane=128, max_batch_tile=256):
    """Runs the fused MLP Pallas kernel.  x: (batch, input_dim) f32."""
    n_layers = len(params) // 2
    batch, input_dim = x.shape
    dims = [input_dim] + [params[2 * i].shape[1] for i in range(n_layers)]
    output_dim = dims[-1]
    pdims = [_round_up(d, lane) for d in dims]        # lane-dense feature dims

    # ---- pad / cast parameters ONCE, outside the kernel -------------------
    ws = []
    for i in range(n_layers):
        w = params[2 * i].astype(jnp.float32)
        w = jnp.pad(w, ((0, pdims[i] - dims[i]), (0, pdims[i + 1] - dims[i + 1])))
        ws.append(w.astype(jnp.bfloat16))             # bf16 MXU operands
    max_w = max(pdims[1:])
    b_all = jnp.zeros((n_layers, max_w), jnp.float32)
    for i in range(n_layers):
        b = params[2 * i + 1].reshape(-1).astype(jnp.float32)
        b_all = b_all.at[i, : dims[i + 1]].set(b)

    # ---- pad / tile the batch ---------------------------------------------
    tm = min(max_batch_tile, _round_up(batch, 16))
    pbatch = _round_up(batch, tm)
    xp = jnp.pad(x.astype(jnp.float32),
                 ((0, pbatch - batch), (0, pdims[0] - dims[0])))
    grid = (pbatch // tm,)

    in_specs = [pl.BlockSpec((tm, pdims[0]), lambda i: (i, 0))]       # streamed
    for w in ws:
        in_specs.append(pl.BlockSpec(w.shape, lambda i: (0, 0)))      # resident
    in_specs.append(pl.BlockSpec(b_all.shape, lambda i: (0, 0)))      # resident
    out_specs = pl.BlockSpec((tm, pdims[-1]), lambda i: (i, 0))       # streamed

    kernel = functools.partial(
        _mlp_kernel, _TASK_IDS[task], _ACT_IDS[activation], tuple(pdims[1:])
    )

    # ---- advisory cost estimate + explicit VMEM budget ---------------------
    flops = 2 * pbatch * sum(pdims[i] * pdims[i + 1] for i in range(n_layers))
    trans = 0
    if activation in ("tanh", "elu"):
        trans += pbatch * sum(pdims[1:-1])
    if task in ("binary_classification", "classification_and_regression"):
        trans += pbatch * pdims[-1]
    bytes_accessed = (xp.size * 4 + sum(w.size * 2 for w in ws)
                      + b_all.size * 4 + pbatch * pdims[-1] * 4)
    cost = pl.CostEstimate(flops=flops, transcendentals=trans,
                           bytes_accessed=bytes_accessed)

    weight_bytes = sum(w.size * 2 for w in ws) + b_all.size * 4       # resident
    stream_bytes = 2 * (tm * pdims[0] * 4 + tm * pdims[-1] * 4)       # dbl-buf
    vmem_limit = int(min(64 * 1024 * 1024,
                         max(4 * 1024 * 1024, 2 * (weight_bytes + stream_bytes))))

    out_padded = pl.pallas_call(
        kernel,
        out_shape=jax.ShapeDtypeStruct((pbatch, pdims[-1]), jnp.float32),
        grid=grid,
        in_specs=in_specs,
        out_specs=out_specs,
        compiler_params=pltpu.CompilerParams(
            dimension_semantics=("parallel",),        # v7x: shard batch on 2 TCs
            vmem_limit_bytes=vmem_limit),
        cost_estimate=cost,
    )(xp, *ws, b_all)

    # Strip batch / lane padding back to the module's logical shape.
    return out_padded[:batch, :output_dim]


# --------------------------------- main ------------------------------------ #

if __name__ == "__main__":
    key = jax.random.PRNGKey(0)

    # Module config (small shapes consistent with MLP.__init__)
    input_dim = 32
    hidden_dims = [64, 32]
    output_dim = 2
    activation = "relu"
    dropout_rate = 0.1        # eval mode -> identity
    task = "classification_and_regression"
    batch = 8

    key, kx, kp = jax.random.split(key, 3)
    x = jax.random.normal(kx, (batch, input_dim), jnp.float32)
    params = init_mlp_params(kp, input_dim, hidden_dims, output_dim)

    out = mlp_forward(x, params, task=task, activation=activation)
    out = jax.block_until_ready(out)

    # Pure-JAX reference mirroring the kernel's numerics (bf16 matmul
    # operands, f32 accumulation), so the comparison is tight.
    def ref_forward(x, params):
        h = x.astype(jnp.float32)
        n_layers = len(params) // 2
        for i in range(n_layers):
            w = params[2 * i].astype(jnp.bfloat16)
            b = params[2 * i + 1].astype(jnp.float32)
            y = jnp.dot(h.astype(jnp.bfloat16), w,
                        preferred_element_type=jnp.float32) + b
            h = jnp.maximum(y, 0.0) if i < n_layers - 1 else y
        cls = jax.nn.sigmoid(h[:, 0:1])
        reg = h[:, 1:2]
        return jnp.concatenate([cls, reg], axis=1)

    ref = ref_forward(x, params)
    assert out.shape == (batch, output_dim), out.shape
    assert jnp.allclose(out, ref, atol=1e-4, rtol=1e-4), (out, ref)

    print("KERNEL_OK")
</pallas_src>

<mosaic_0001>
module attributes {stable_mosaic.version = 11 : i64} {
  func.func @_mlp_kernel(%arg0: i32, %arg1: memref<16x128xf32, #tpu.memory_space<vmem>>, %arg2: memref<128x128xbf16, #tpu.memory_space<vmem>>, %arg3: memref<128x128xbf16, #tpu.memory_space<vmem>>, %arg4: memref<128x128xbf16, #tpu.memory_space<vmem>>, %arg5: memref<3x128xf32, #tpu.memory_space<vmem>>, %arg6: memref<16x128xf32, #tpu.memory_space<vmem>>) attributes {dimension_semantics = [#tpu.dimension_semantics<parallel>], iteration_bounds = array<i64: 1>, scalar_prefetch = 0 : i64, scratch_operands = 0 : i64, tpu.core_type = #tpu.core_type<tc>, window_params = [{transform_indices = @transform_0, window_bounds = array<i64: 16, 128>}, {pipeline_mode = #tpu.pipeline_mode<synchronous>, transform_indices = @transform_1, window_bounds = array<i64: 128, 128>}, {pipeline_mode = #tpu.pipeline_mode<synchronous>, transform_indices = @transform_2, window_bounds = array<i64: 128, 128>}, {pipeline_mode = #tpu.pipeline_mode<synchronous>, transform_indices = @transform_3, window_bounds = array<i64: 128, 128>}, {pipeline_mode = #tpu.pipeline_mode<synchronous>, transform_indices = @transform_4, window_bounds = array<i64: 3, 128>}, {transform_indices = @transform_5, window_bounds = array<i64: 16, 128>}]} {
    %c0 = arith.constant 0 : index
    %c0_0 = arith.constant 0 : index
    %0 = vector.load %arg1[%c0, %c0_0] : memref<16x128xf32, #tpu.memory_space<vmem>>, vector<16x128xf32>
    %c0_1 = arith.constant 0 : index
    %c0_2 = arith.constant 0 : index
    %1 = vector.load %arg2[%c0_1, %c0_2] : memref<128x128xbf16, #tpu.memory_space<vmem>>, vector<128x128xbf16>
    %c0_3 = arith.constant 0 : index
    %c0_4 = arith.constant 0 : index
    %2 = vector.load %arg5[%c0_3, %c0_4] : memref<3x128xf32, #tpu.memory_space<vmem>>, vector<1x128xf32>
    %3 = arith.truncf %0 : vector<16x128xf32> to vector<16x128xbf16>
    %cst = arith.constant dense<0.000000e+00> : vector<16x128xf32>
    %4 = tpu.matmul %3, %1, %cst {dimension_numbers = #tpu.dot_dimension_numbers<[1], [0], [0], [1], [0, 0, 1, 1], [], []>} : vector<16x128xbf16>, vector<128x128xbf16>, vector<16x128xf32> -> vector<16x128xf32>
    %5 = vector.broadcast %2 : vector<1x128xf32> to vector<16x128xf32>
    %6 = arith.addf %4, %5 : vector<16x128xf32>
    %cst_5 = arith.constant 0.000000e+00 : f32
    %7 = vector.broadcast %cst_5 : f32 to vector<16x128xf32>
    %8 = arith.maximumf %6, %7 : vector<16x128xf32>
    %c0_6 = arith.constant 0 : index
    %c0_7 = arith.constant 0 : index
    %9 = vector.load %arg3[%c0_6, %c0_7] : memref<128x128xbf16, #tpu.memory_space<vmem>>, vector<128x128xbf16>
    %c1 = arith.constant 1 : index
    %c0_8 = arith.constant 0 : index
    %10 = vector.load %arg5[%c1, %c0_8] : memref<3x128xf32, #tpu.memory_space<vmem>>, vector<1x128xf32>
    %11 = arith.truncf %8 : vector<16x128xf32> to vector<16x128xbf16>
    %cst_9 = arith.constant dense<0.000000e+00> : vector<16x128xf32>
    %12 = tpu.matmul %11, %9, %cst_9 {dimension_numbers = #tpu.dot_dimension_numbers<[1], [0], [0], [1], [0, 0, 1, 1], [], []>} : vector<16x128xbf16>, vector<128x128xbf16>, vector<16x128xf32> -> vector<16x128xf32>
    %13 = vector.broadcast %10 : vector<1x128xf32> to vector<16x128xf32>
    %14 = arith.addf %12, %13 : vector<16x128xf32>
    %cst_10 = arith.constant 0.000000e+00 : f32
    %15 = vector.broadcast %cst_10 : f32 to vector<16x128xf32>
    %16 = arith.maximumf %14, %15 : vector<16x128xf32>
    %c0_11 = arith.constant 0 : index
    %c0_12 = arith.constant 0 : index
    %17 = vector.load %arg4[%c0_11, %c0_12] : memref<128x128xbf16, #tpu.memory_space<vmem>>, vector<128x128xbf16>
    %c2 = arith.constant 2 : index
    %c0_13 = arith.constant 0 : index
    %18 = vector.load %arg5[%c2, %c0_13] : memref<3x128xf32, #tpu.memory_space<vmem>>, vector<1x128xf32>
    %19 = arith.truncf %16 : vector<16x128xf32> to vector<16x128xbf16>
    %cst_14 = arith.constant dense<0.000000e+00> : vector<16x128xf32>
    %20 = tpu.matmul %19, %17, %cst_14 {dimension_numbers = #tpu.dot_dimension_numbers<[1], [0], [0], [1], [0, 0, 1, 1], [], []>} : vector<16x128xbf16>, vector<128x128xbf16>, vector<16x128xf32> -> vector<16x128xf32>
    %21 = vector.broadcast %18 : vector<1x128xf32> to vector<16x128xf32>
    %22 = arith.addf %20, %21 : vector<16x128xf32>
    %23 = tpu.iota {dimensions = array<i32: 1>} : vector<16x128xi32>
    %c0_i32 = arith.constant 0 : i32
    %24 = vector.broadcast %c0_i32 : i32 to vector<16x128xi32>
    %25 = arith.cmpi eq, %23, %24 : vector<16x128xi32>
    %26 = arith.negf %22 : vector<16x128xf32>
    %27 = math.exp %26 : vector<16x128xf32>
    %cst_15 = arith.constant 1.000000e+00 : f32
    %28 = vector.broadcast %cst_15 : f32 to vector<16x128xf32>
    %29 = arith.addf %28, %27 : vector<16x128xf32>
    %30 = arith.divf %28, %29 : vector<16x128xf32>
    %31 = arith.select %25, %30, %22 : vector<16x128xi1>, vector<16x128xf32>
    %c0_16 = arith.constant 0 : index
    %c0_17 = arith.constant 0 : index
    %32 = vector.load %arg6[%c0_16, %c0_17] : memref<16x128xf32, #tpu.memory_space<vmem>>, vector<16x128xf32>
    tpu.vector_store %arg6[%c0_16, %c0_17], %31 {strides = array<i32>} : memref<16x128xf32, #tpu.memory_space<vmem>>, vector<16x128xf32>,
    return
  }
  func.func @transform_0(%arg0: i32) -> (i32, i32) {
    %c0_i32 = arith.constant 0 : i32
    %c0_i32_0 = arith.constant 0 : i32
    return %arg0, %c0_i32 : i32, i32
  }
  func.func @transform_1(%arg0: i32) -> (i32, i32) {
    %c0_i32 = arith.constant 0 : i32
    %c0_i32_0 = arith.constant 0 : i32
    %c0_i32_1 = arith.constant 0 : i32
    return %c0_i32, %c0_i32_0 : i32, i32
  }
  func.func @transform_2(%arg0: i32) -> (i32, i32) {
    %c0_i32 = arith.constant 0 : i32
    %c0_i32_0 = arith.constant 0 : i32
    %c0_i32_1 = arith.constant 0 : i32
    return %c0_i32, %c0_i32_0 : i32, i32
  }
  func.func @transform_3(%arg0: i32) -> (i32, i32) {
    %c0_i32 = arith.constant 0 : i32
    %c0_i32_0 = arith.constant 0 : i32
    %c0_i32_1 = arith.constant 0 : i32
    return %c0_i32, %c0_i32_0 : i32, i32
  }
  func.func @transform_4(%arg0: i32) -> (i32, i32) {
    %c0_i32 = arith.constant 0 : i32
    %c0_i32_0 = arith.constant 0 : i32
    %c0_i32_1 = arith.constant 0 : i32
    return %c0_i32, %c0_i32_0 : i32, i32
  }
  func.func @transform_5(%arg0: i32) -> (i32, i32) {
    %c0_i32 = arith.constant 0 : i32
    %c0_i32_0 = arith.constant 0 : i32
    return %arg0, %c0_i32 : i32, i32
  }
}

</mosaic_0001>

<llo_original>
// kernel: tpu_custom_call.1
$region0: #{tpu_custom_call.1}
  #allocation0 [shape = 'u32[]', space=smem, size = 0x4, offset = 0x4, fixed_abs, tag = 'smem constant byte address 0x4 - core index']
  #allocation1 [shape = 'u32[144,128]{1,0:T(1,128)}', space=vmem, size = 0x12000, scoped, tag = 'internal scratch']
  %s0 = inlined_call_operand.hbm [shape: f32[16,128], index: 0, kind: input, shape index: {}]
  %s1 = inlined_call_operand.hbm [shape: bf16[128,128], index: 1, kind: input, shape index: {}]
  %s2 = inlined_call_operand.hbm [shape: bf16[128,128], index: 2, kind: input, shape index: {}]
  %s3 = inlined_call_operand.hbm [shape: bf16[128,128], index: 3, kind: input, shape index: {}]
  %s4 = inlined_call_operand.vmem [shape: f32[3,128], index: 4, kind: input, shape index: {}]
  %s5 = inlined_call_operand.hbm [shape: f32[16,128], index: 5, kind: output, shape index: {}]
  %s6 = sld [smem:[#allocation0]]
  $region46: #{tpu_custom_call.1} parent=0
    _
  %s8 = ssub.s32 1, %s6
  %s9 = scalar_select 0, %s8, %s6
  $region1: #{tpu_custom_call.1} parent=0
    #allocation2 [shape = 'u8[8192]{0}', space=vmem, size = 0x2000, scoped, tag = 'input window, operand 0, single buffered']
    #allocation3 [shape = 's32[1]{0}', space=sflag, size = 0x4, scoped, tag = 'scoped memory for tpu_custom_call.1']
    #allocation4 [shape = 's32[1]{0}', space=sflag, size = 0x4, scoped, tag = 'scoped memory for tpu_custom_call.1']
    #allocation5 [shape = 'u8[32768]{0}', space=vmem, size = 0x8000, scoped, tag = 'input window, operand 1, single buffered']
    #allocation6 [shape = 's32[1]{0}', space=sflag, size = 0x4, scoped, tag = 'scoped memory for tpu_custom_call.1']
    #allocation7 [shape = 'u8[32768]{0}', space=vmem, size = 0x8000, scoped, tag = 'input window, operand 2, single buffered']
    #allocation8 [shape = 'u8[32768]{0}', space=vmem, size = 0x8000, scoped, tag = 'input window, operand 3, single buffered']
    #allocation9 [shape = 's32[1]{0}', space=sflag, size = 0x4, scoped, tag = 'scoped memory for tpu_custom_call.1']
    #allocation10 [shape = 'u8[8192]{0}', space=vmem, size = 0x2000, scoped, tag = 'output window, operand 0, single buffered']
    %10 = vsyncpa [#allocation3], 0
    %11 = vsyncpa [#allocation6], 0
    %12 = vsyncpa [#allocation9], 0
    %13 = vsyncpa [#allocation4], 0
    // Predicated region
    $region2: #{tpu_custom_call.1} parent=1 // pred_check
      _
    $region3: #{tpu_custom_call.1} parent=1 // pred_check_branch
      %15 = sbr.rel (0) target = $region5
    $region4: #{tpu_custom_call.1} parent=1 // pred_region
      %s17 = ssub.s32 256, 256
      %18 = vsyncadd [#allocation3], %s17
      %s19 = sshll.u32 [#allocation2], 4
      %s20 = int_to_ptr.vmem [resolvable:$true] %s19
      %25 = dma.hbm_to_vmem [thread:$0]  %s0, 256, %s20, [#allocation3], 128, 128, 8
    $region5: #{tpu_custom_call.1} parent=1 // pred_fallthru
      _
    // Predicated region
    $region6: #{tpu_custom_call.1} parent=1 // pred_check
      _
    $region7: #{tpu_custom_call.1} parent=1 // pred_check_branch
      %27 = sbr.rel (0) target = $region9
    $region8: #{tpu_custom_call.1} parent=1 // pred_region
      %s29 = ssub.s32 1024, 1024
      %30 = vsyncadd [#allocation6], %s29
      %s31 = sshll.u32 [#allocation5], 4
      %s32 = int_to_ptr.vmem [resolvable:$true] %s31
      %37 = dma.hbm_to_vmem [thread:$0]  %s1, 1024, %s32, [#allocation6], 64, 64, 4
    $region9: #{tpu_custom_call.1} parent=1 // pred_fallthru
      _
    // Predicated region
    $region10: #{tpu_custom_call.1} parent=1 // pred_check
      _
    $region11: #{tpu_custom_call.1} parent=1 // pred_check_branch
      %39 = sbr.rel (0) target = $region13
    $region12: #{tpu_custom_call.1} parent=1 // pred_region
      %s41 = ssub.s32 1024, 1024
      %42 = vsyncadd [#allocation6], %s41
      %s43 = sshll.u32 [#allocation7], 4
      %s44 = int_to_ptr.vmem [resolvable:$true] %s43
      %49 = dma.hbm_to_vmem [thread:$0]  %s2, 1024, %s44, [#allocation6], 64, 64, 4
    $region13: #{tpu_custom_call.1} parent=1 // pred_fallthru
      _
    // Predicated region
    $region14: #{tpu_custom_call.1} parent=1 // pred_check
      _
    $region15: #{tpu_custom_call.1} parent=1 // pred_check_branch
      %51 = sbr.rel (0) target = $region17
    $region16: #{tpu_custom_call.1} parent=1 // pred_region
      %s53 = ssub.s32 1024, 1024
      %54 = vsyncadd [#allocation9], %s53
      %s55 = sshll.u32 [#allocation8], 4
      %s56 = int_to_ptr.vmem [resolvable:$true] %s55
      %61 = dma.hbm_to_vmem [thread:$0]  %s3, 1024, %s56, [#allocation9], 64, 64, 4
    $region17: #{tpu_custom_call.1} parent=1 // pred_fallthru
      _
    // Predicated region
    $region18: #{tpu_custom_call.1} parent=1 // pred_check
      _
    $region19: #{tpu_custom_call.1} parent=1 // pred_check_branch
      %63 = sbr.rel (0) target = $region21
    $region20: #{tpu_custom_call.1} parent=1 // pred_region
      _
    $region21: #{tpu_custom_call.1} parent=1 // pred_fallthru
      _
    // Predicated region
    $region22: #{tpu_custom_call.1} parent=1 // pred_check
      _
    $region23: #{tpu_custom_call.1} parent=1 // pred_check_branch
      %65 = sbr.rel (0) target = $region25
    $region24: #{tpu_custom_call.1} parent=1 // pred_region
      %66 = dma.done [#allocation3], 256
    $region25: #{tpu_custom_call.1} parent=1 // pred_fallthru
      _
    // Predicated region
    $region26: #{tpu_custom_call.1} parent=1 // pred_check
      _
    $region27: #{tpu_custom_call.1} parent=1 // pred_check_branch
      %68 = sbr.rel (0) target = $region29
    $region28: #{tpu_custom_call.1} parent=1 // pred_region
      %69 = dma.done [#allocation6], 1024
    $region29: #{tpu_custom_call.1} parent=1 // pred_fallthru
      _
    // Predicated region
    $region30: #{tpu_custom_call.1} parent=1 // pred_check
      _
    $region31: #{tpu_custom_call.1} parent=1 // pred_check_branch
      %71 = sbr.rel (0) target = $region33
    $region32: #{tpu_custom_call.1} parent=1 // pred_region
      %72 = dma.done [#allocation6], 1024
    $region33: #{tpu_custom_call.1} parent=1 // pred_fallthru
      _
    // Predicated region
    $region34: #{tpu_custom_call.1} parent=1 // pred_check
      _
    $region35: #{tpu_custom_call.1} parent=1 // pred_check_branch
      %74 = sbr.rel (0) target = $region37
    $region36: #{tpu_custom_call.1} parent=1 // pred_region
      %75 = dma.done [#allocation9], 1024
    $region37: #{tpu_custom_call.1} parent=1 // pred_fallthru
      _
    %v77 = vld [vmem:[#allocation2] sm:$0xff]
    %v78 = vld [vmem:[#allocation2 + $0x8] sm:$0xff]
    %v79 = vld [vmem:[#allocation5] sm:$0xf]
    %v80 = vld [vmem:[#allocation5 + $0x4] sm:$0xf]
    %v81 = vld [vmem:[#allocation5 + $0x8] sm:$0xf]
    %v82 = vld [vmem:[#allocation5 + $0xc] sm:$0xf]
    %v83 = vld [vmem:[#allocation5 + $0x10] sm:$0xf]
    %v84 = vld [vmem:[#allocation5 + $0x14] sm:$0xf]
    %v85 = vld [vmem:[#allocation5 + $0x18] sm:$0xf]
    %v86 = vld [vmem:[#allocation5 + $0x1c] sm:$0xf]
    %v87 = vld [vmem:[#allocation5 + $0x20] sm:$0xf]
    %v88 = vld [vmem:[#allocation5 + $0x24] sm:$0xf]
    %v89 = vld [vmem:[#allocation5 + $0x28] sm:$0xf]
    %v90 = vld [vmem:[#allocation5 + $0x2c] sm:$0xf]
    %v91 = vld [vmem:[#allocation5 + $0x30] sm:$0xf]
    %v92 = vld [vmem:[#allocation5 + $0x34] sm:$0xf]
    %v93 = vld [vmem:[#allocation5 + $0x38] sm:$0xf]
    %v94 = vld [vmem:[#allocation5 + $0x3c] sm:$0xf]
    %v95 = vld [vmem:[%s4] sm:$0x1]
    %v96 = vpack.c.bf16 %v78, %v77
    %v97 = vlaneseq
    %v98 = vshrl.u32 %v97, 7
    %v99 = vsub.s32 0, %v98
    %v100 = vrot.slane %v95, %v99
    %v117 = vunpack.c.l.b16 %v79
    %v118 = vunpack.c.l.b16 %v80
    %v119 = vunpack.c.l.b16 %v81
    %v120 = vunpack.c.l.b16 %v82
    %v121 = vunpack.c.l.b16 %v83
    %v122 = vunpack.c.l.b16 %v84
    %v123 = vunpack.c.l.b16 %v85
    %v124 = vunpack.c.l.b16 %v86
    %v125 = vunpack.c.l.b16 %v87
    %v126 = vunpack.c.l.b16 %v88
    %v127 = vunpack.c.l.b16 %v89
    %v128 = vunpack.c.l.b16 %v90
    %v129 = vunpack.c.l.b16 %v91
    %v130 = vunpack.c.l.b16 %v92
    %v131 = vunpack.c.l.b16 %v93
    %v132 = vunpack.c.l.b16 %v94
    %v133 = vpack.c.b16 %v118, %v117
    %v134 = vpack.c.b16 %v120, %v119
    %v135 = vpack.c.b16 %v122, %v121
    %v136 = vpack.c.b16 %v124, %v123
    %v137 = vpack.c.b16 %v126, %v125
    %v138 = vpack.c.b16 %v128, %v127
    %v139 = vpack.c.b16 %v130, %v129
    %v140 = vpack.c.b16 %v132, %v131
    %149 = vmatprep.subr.bf16.mxu0 0
    %150 = vmatpush1.bf16.msra.mxu0 %v133
    %151 = vmatprep.subr.bf16.mxu0 0
    %152 = vmatpush1.bf16.msra.mxu0 %v134
    %153 = vmatprep.subr.bf16.mxu0 0
    %154 = vmatpush1.bf16.msra.mxu0 %v135
    %155 = vmatprep.subr.bf16.mxu0 0
    %156 = vmatpush1.bf16.msra.mxu0 %v136
    %157 = vmatprep.subr.bf16.mxu0 0
    %158 = vmatpush1.bf16.msra.mxu0 %v137
    %159 = vmatprep.subr.bf16.mxu0 0
    %160 = vmatpush1.bf16.msra.mxu0 %v138
    %161 = vmatprep.subr.bf16.mxu0 0
    %162 = vmatpush1.bf16.msra.mxu0 %v139
    %163 = vmatprep.subr.bf16.mxu0 0
    %164 = vmatpush1.bf16.msra.mxu0 %v140
    %165 = vmatprep.subr.bf16.mxu0 0
    %166 = vmatpush1.bf16.msra.mxu0 0
    %167 = vmatprep.subr.bf16.mxu0 0
    %168 = vmatpush1.bf16.msra.mxu0 0
    %169 = vmatprep.subr.bf16.mxu0 0
    %170 = vmatpush1.bf16.msra.mxu0 0
    %171 = vmatprep.subr.bf16.mxu0 0
    %172 = vmatpush1.bf16.msra.mxu0 0
    %173 = vmatprep.subr.bf16.mxu0 0
    %174 = vmatpush1.bf16.msra.mxu0 0
    %175 = vmatprep.subr.bf16.mxu0 0
    %176 = vmatpush1.bf16.msra.mxu0 0
    %177 = vmatprep.subr.bf16.mxu0 0
    %178 = vmatpush1.bf16.msra.mxu0 0
    %179 = vmatprep.subr.bf16.mxu0 0
    %180 = vmatpush1.bf16.msra.mxu0 0
    %181 = vmatprep.mubr.bf16.mxu0 0
    %182 = vmatmul.mubr.bf16.gmra.mrb[0].mxu0 %v96
    %v183 = vpop.f32.mrb[0].mxu0
    %v184 = vadd.f32 %v100, %v183
    %v185 = vpop.f32.mrb[0].mxu0
    %v186 = vpop.f32.mrb[0].mxu0
    %v187 = vadd.f32 %v100, %v186
    %v188 = vpop.f32.mrb[0].mxu0
    %189 = vdwg.mxu0
    %v190 = vmax.f32 %v184, 0.0
    %v191 = vmax.f32 %v187, 0.0
    %v192 = vld [vmem:[#allocation7] sm:$0xf]
    %v193 = vld [vmem:[#allocation7 + $0x4] sm:$0xf]
    %v194 = vld [vmem:[#allocation7 + $0x8] sm:$0xf]
    %v195 = vld [vmem:[#allocation7 + $0xc] sm:$0xf]
    %v196 = vld [vmem:[#allocation7 + $0x10] sm:$0xf]
    %v197 = vld [vmem:[#allocation7 + $0x14] sm:$0xf]
    %v198 = vld [vmem:[#allocation7 + $0x18] sm:$0xf]
    %v199 = vld [vmem:[#allocation7 + $0x1c] sm:$0xf]
    %v200 = vld [vmem:[#allocation7 + $0x20] sm:$0xf]
    %v201 = vld [vmem:[#allocation7 + $0x24] sm:$0xf]
    %v202 = vld [vmem:[#allocation7 + $0x28] sm:$0xf]
    %v203 = vld [vmem:[#allocation7 + $0x2c] sm:$0xf]
    %v204 = vld [vmem:[#allocation7 + $0x30] sm:$0xf]
    %v205 = vld [vmem:[#allocation7 + $0x34] sm:$0xf]
    %v206 = vld [vmem:[#allocation7 + $0x38] sm:$0xf]
    %v207 = vld [vmem:[#allocation7 + $0x3c] sm:$0xf]
    %v208 = vld [vmem:[%s4 + $0x1] sm:$0x1]
    %v209 = vpack.c.bf16 %v191, %v190
    %v210 = vlaneseq
    %v211 = vshrl.u32 %v210, 7
    %v212 = vsub.s32 0, %v211
    %v213 = vrot.slane %v208, %v212
    %v230 = vunpack.c.l.b16 %v192
    %v231 = vunpack.c.l.b16 %v193
    %v232 = vunpack.c.l.b16 %v194
    %v233 = vunpack.c.l.b16 %v195
    %v234 = vunpack.c.l.b16 %v196
    %v235 = vunpack.c.l.b16 %v197
    %v236 = vunpack.c.l.b16 %v198
    %v237 = vunpack.c.l.b16 %v199
    %v238 = vunpack.c.l.b16 %v200
    %v239 = vunpack.c.l.b16 %v201
    %v240 = vunpack.c.l.b16 %v202
    %v241 = vunpack.c.l.b16 %v203
    %v242 = vunpack.c.l.b16 %v204
    %v243 = vunpack.c.l.b16 %v205
    %v244 = vunpack.c.l.b16 %v206
    %v245 = vunpack.c.l.b16 %v207
    %v246 = vpack.c.b16 %v231, %v230
    %v247 = vpack.c.b16 %v233, %v232
    %v248 = vpack.c.b16 %v235, %v234
    %v249 = vpack.c.b16 %v237, %v236
    %v250 = vpack.c.b16 %v239, %v238
    %v251 = vpack.c.b16 %v241, %v240
    %v252 = vpack.c.b16 %v243, %v242
    %v253 = vpack.c.b16 %v245, %v244
    %262 = vmatprep.subr.bf16.mxu0 0
    %263 = vmatpush1.bf16.msra.mxu0 %v246
    %264 = vmatprep.subr.bf16.mxu0 0
    %265 = vmatpush1.bf16.msra.mxu0 %v247
    %266 = vmatprep.subr.bf16.mxu0 0
    %267 = vmatpush1.bf16.msra.mxu0 %v248
    %268 = vmatprep.subr.bf16.mxu0 0
    %269 = vmatpush1.bf16.msra.mxu0 %v249
    %270 = vmatprep.subr.bf16.mxu0 0
    %271 = vmatpush1.bf16.msra.mxu0 %v250
    %272 = vmatprep.subr.bf16.mxu0 0
    %273 = vmatpush1.bf16.msra.mxu0 %v251
    %274 = vmatprep.subr.bf16.mxu0 0
    %275 = vmatpush1.bf16.msra.mxu0 %v252
    %276 = vmatprep.subr.bf16.mxu0 0
    %277 = vmatpush1.bf16.msra.mxu0 %v253
    %278 = vmatprep.subr.bf16.mxu0 0
    %279 = vmatpush1.bf16.msra.mxu0 0
    %280 = vmatprep.subr.bf16.mxu0 0
    %281 = vmatpush1.bf16.msra.mxu0 0
    %282 = vmatprep.subr.bf16.mxu0 0
    %283 = vmatpush1.bf16.msra.mxu0 0
    %284 = vmatprep.subr.bf16.mxu0 0
    %285 = vmatpush1.bf16.msra.mxu0 0
    %286 = vmatprep.subr.bf16.mxu0 0
    %287 = vmatpush1.bf16.msra.mxu0 0
    %288 = vmatprep.subr.bf16.mxu0 0
    %289 = vmatpush1.bf16.msra.mxu0 0
    %290 = vmatprep.subr.bf16.mxu0 0
    %291 = vmatpush1.bf16.msra.mxu0 0
    %292 = vmatprep.subr.bf16.mxu0 0
    %293 = vmatpush1.bf16.msra.mxu0 0
    %294 = vmatprep.mubr.bf16.mxu0 0
    %295 = vmatmul.mubr.bf16.gmra.mrb[0].mxu0 %v209
    %v296 = vpop.f32.mrb[0].mxu0
    %v297 = vadd.f32 %v213, %v296
    %v298 = vpop.f32.mrb[0].mxu0
    %v299 = vpop.f32.mrb[0].mxu0
    %v300 = vadd.f32 %v213, %v299
    %v301 = vpop.f32.mrb[0].mxu0
    %302 = vdwg.mxu0
    %v303 = vmax.f32 %v297, 0.0
    %v304 = vmax.f32 %v300, 0.0
    %v305 = vld [vmem:[#allocation8] sm:$0xf]
    %v306 = vld [vmem:[#allocation8 + $0x4] sm:$0xf]
    %v307 = vld [vmem:[#allocation8 + $0x8] sm:$0xf]
    %v308 = vld [vmem:[#allocation8 + $0xc] sm:$0xf]
    %v309 = vld [vmem:[#allocation8 + $0x10] sm:$0xf]
    %v310 = vld [vmem:[#allocation8 + $0x14] sm:$0xf]
    %v311 = vld [vmem:[#allocation8 + $0x18] sm:$0xf]
    %v312 = vld [vmem:[#allocation8 + $0x1c] sm:$0xf]
    %v313 = vld [vmem:[#allocation8 + $0x20] sm:$0xf]
    %v314 = vld [vmem:[#allocation8 + $0x24] sm:$0xf]
    %v315 = vld [vmem:[#allocation8 + $0x28] sm:$0xf]
    %v316 = vld [vmem:[#allocation8 + $0x2c] sm:$0xf]
    %v317 = vld [vmem:[#allocation8 + $0x30] sm:$0xf]
    %v318 = vld [vmem:[#allocation8 + $0x34] sm:$0xf]
    %v319 = vld [vmem:[#allocation8 + $0x38] sm:$0xf]
    %v320 = vld [vmem:[#allocation8 + $0x3c] sm:$0xf]
    %v321 = vld [vmem:[%s4 + $0x2] sm:$0x1]
    %v322 = vpack.c.bf16 %v304, %v303
    %v323 = vlaneseq
    %v324 = vshrl.u32 %v323, 7
    %v325 = vsub.s32 0, %v324
    %v326 = vrot.slane %v321, %v325
    %v343 = vunpack.c.l.b16 %v305
    %v344 = vunpack.c.l.b16 %v306
    %v345 = vunpack.c.l.b16 %v307
    %v346 = vunpack.c.l.b16 %v308
    %v347 = vunpack.c.l.b16 %v309
    %v348 = vunpack.c.l.b16 %v310
    %v349 = vunpack.c.l.b16 %v311
    %v350 = vunpack.c.l.b16 %v312
    %v351 = vunpack.c.l.b16 %v313
    %v352 = vunpack.c.l.b16 %v314
    %v353 = vunpack.c.l.b16 %v315
    %v354 = vunpack.c.l.b16 %v316
    %v355 = vunpack.c.l.b16 %v317
    %v356 = vunpack.c.l.b16 %v318
    %v357 = vunpack.c.l.b16 %v319
    %v358 = vunpack.c.l.b16 %v320
    %v359 = vpack.c.b16 %v344, %v343
    %v360 = vpack.c.b16 %v346, %v345
    %v361 = vpack.c.b16 %v348, %v347
    %v362 = vpack.c.b16 %v350, %v349
    %v363 = vpack.c.b16 %v352, %v351
    %v364 = vpack.c.b16 %v354, %v353
    %v365 = vpack.c.b16 %v356, %v355
    %v366 = vpack.c.b16 %v358, %v357
    %375 = vmatprep.subr.bf16.mxu0 0
    %376 = vmatpush1.bf16.msra.mxu0 %v359
    %377 = vmatprep.subr.bf16.mxu0 0
    %378 = vmatpush1.bf16.msra.mxu0 %v360
    %379 = vmatprep.subr.bf16.mxu0 0
    %380 = vmatpush1.bf16.msra.mxu0 %v361
    %381 = vmatprep.subr.bf16.mxu0 0
    %382 = vmatpush1.bf16.msra.mxu0 %v362
    %383 = vmatprep.subr.bf16.mxu0 0
    %384 = vmatpush1.bf16.msra.mxu0 %v363
    %385 = vmatprep.subr.bf16.mxu0 0
    %386 = vmatpush1.bf16.msra.mxu0 %v364
    %387 = vmatprep.subr.bf16.mxu0 0
    %388 = vmatpush1.bf16.msra.mxu0 %v365
    %389 = vmatprep.subr.bf16.mxu0 0
    %390 = vmatpush1.bf16.msra.mxu0 %v366
    %391 = vmatprep.subr.bf16.mxu0 0
    %392 = vmatpush1.bf16.msra.mxu0 0
    %393 = vmatprep.subr.bf16.mxu0 0
    %394 = vmatpush1.bf16.msra.mxu0 0
    %395 = vmatprep.subr.bf16.mxu0 0
    %396 = vmatpush1.bf16.msra.mxu0 0
    %397 = vmatprep.subr.bf16.mxu0 0
    %398 = vmatpush1.bf16.msra.mxu0 0
    %399 = vmatprep.subr.bf16.mxu0 0
    %400 = vmatpush1.bf16.msra.mxu0 0
    %401 = vmatprep.subr.bf16.mxu0 0
    %402 = vmatpush1.bf16.msra.mxu0 0
    %403 = vmatprep.subr.bf16.mxu0 0
    %404 = vmatpush1.bf16.msra.mxu0 0
    %405 = vmatprep.subr.bf16.mxu0 0
    %406 = vmatpush1.bf16.msra.mxu0 0
    %407 = vmatprep.mubr.bf16.mxu0 0
    %408 = vmatmul.mubr.bf16.gmra.mrb[0].mxu0 %v322
    %v409 = vpop.f32.mrb[0].mxu0
    %v410 = vadd.f32 %v326, %v409
    %v411 = vpop.f32.mrb[0].mxu0
    %v412 = vpop.f32.mrb[0].mxu0
    %v413 = vadd.f32 %v326, %v412
    %v414 = vpop.f32.mrb[0].mxu0
    %415 = vdwg.mxu0
    %v416 = vlaneseq
    %v417 = vand.u32 %v416, 127
    %vm418 = vcmp.eq.s32.totalorder %v417, 0
    %v419 = vxor.u32 %v410, 2147483648
    %v420 = vxor.u32 %v413, 2147483648
    %v421 = vmul.f32 %v419, 1.442695
    %v422 = vpow.pop %v421
    %v423 = vmul.f32 %v420, 1.442695
    %v424 = vpow.pop %v423
    %v425 = vadd.f32 %v422, 1.0
    %v426 = vadd.f32 %v424, 1.0
    %v427 = vrcp.pop %v425
    %v428 = vmul.f32 1.0, %v427
    %v429 = vrcp.pop %v426
    %v430 = vmul.f32 1.0, %v429
    %v431 = vsel %vm418, %v428, %v410
    %v432 = vsel %vm418, %v430, %v413
    %433 = vst [vmem:[#allocation10] sm:$0xff] %v431
    %434 = vst [vmem:[#allocation10 + $0x8] sm:$0xff] %v432
    // Predicated region
    $region38: #{tpu_custom_call.1} parent=1 // pred_check
      _
    $region39: #{tpu_custom_call.1} parent=1 // pred_check_branch
      %436 = sbr.rel (0) target = $region41
    $region40: #{tpu_custom_call.1} parent=1 // pred_region
      %s438 = ssub.s32 256, 256
      %439 = vsyncadd [#allocation4], %s438
      %s440 = sshll.u32 [#allocation10], 4
      %s441 = int_to_ptr.vmem [resolvable:$true] %s440
      %446 = dma.vmem_to_hbm [thread:$0]  %s441, 256, %s5, [#allocation4], 128, 128, 8
    $region41: #{tpu_custom_call.1} parent=1 // pred_fallthru
      _
    // Predicated region
    $region42: #{tpu_custom_call.1} parent=1 // pred_check
      _
    $region43: #{tpu_custom_call.1} parent=1 // pred_check_branch
      %448 = sbr.rel (0) target = $region45
    $region44: #{tpu_custom_call.1} parent=1 // pred_region
      %449 = dma.done [#allocation4], 256
    $region45: #{tpu_custom_call.1} parent=1 // pred_fallthru
      _
    %450 = vsyncpa [#allocation3], 1
    %451 = vsyncpa [#allocation6], 1
    %452 = vsyncpa [#allocation9], 1
    %453 = vsyncpa [#allocation4], 1

</llo_original>
